<compile_context>
chip_gen: v7x
topology: tpu7x:2x2x1
jax: 0.10.0
libtpu: 0.0.40
codegen_flags: <defaults>
</compile_context>

<pallas_src>
import functools

import jax
import jax.numpy as jnp
from jax.experimental import pallas as pl
from jax.experimental.pallas import tpu as pltpu

_NEG_INF = -1e30


def _pow_gamma(x, gamma):
    """(x)**gamma with the common gamma=2 case kept as a plain square."""
    if gamma == 2.0:
        return x * x
    if gamma == 1.0:
        return x
    return x ** gamma


def _make_atpf_kernel(B, TB, L, has_mask, alpha, gamma, smooth, needs_row_mask):
    inv_b = 1.0 / float(B)

    def kernel(*refs):
        if has_mask:
            logits_ref, labels_ref, mask_ref, out_ref, acc_ref = refs
        else:
            logits_ref, labels_ref, out_ref, acc_ref = refs

        step = pl.program_id(0)

        @pl.when(step == 0)
        def _():
            acc_ref[...] = jnp.zeros_like(acc_ref)

        x = logits_ref[...].astype(jnp.float32)      # (TB, L)
        y = labels_ref[...].astype(jnp.float32)      # (TB, L)

        if needs_row_mask:
            # Ragged last tile: rows >= B are padding; neutralize them.
            valid2d = (
                jax.lax.broadcasted_iota(jnp.int32, (TB, L), 0) + step * TB
            ) < B
            x = jnp.where(valid2d, x, 0.0)
            y = jnp.where(valid2d, y, 0.0)

        if has_mask:
            keep = mask_ref[...] != 0                # works for int8 / f32 masks
            if needs_row_mask:
                keep = jnp.where(valid2d, keep, True)
            x = jnp.where(keep, x, _NEG_INF)

        col = jax.lax.broadcasted_iota(jnp.int32, (TB, L), 1)
        not_col0 = col != 0
        y = jnp.where(not_col0, y, 0.0)              # labels[:, 0] = 0

        th = x[:, 0:1]                               # (TB, 1) adaptive threshold
        delta = x - th

        # Stable pair-wise log-softmax:
        #   logpt_pos = log softmax([x_i, th])[0] = log_sigmoid(x_i - th)
        #   logpt_neg = log softmax([th, x_i])[0] = log_sigmoid(th - x_i)
        log1p_term = jnp.log1p(jnp.exp(-jnp.abs(delta)))
        logpt_pos = jnp.minimum(delta, 0.0) - log1p_term
        logpt_neg = jnp.minimum(-delta, 0.0) - log1p_term

        def focal_term(logpt):
            pt = jnp.clip(jnp.exp(logpt), smooth, 1.0 - smooth)
            return (-alpha) * _pow_gamma(1.0 - pt, gamma) * logpt

        w_pos = y
        neg_keep = not_col0
        if has_mask:
            neg_keep = jnp.logical_and(neg_keep, keep)
        w_neg = jnp.where(neg_keep, 1.0 - y, 0.0)

        num1 = jnp.sum(focal_term(logpt_pos) * w_pos, axis=-1, keepdims=True)
        den1 = jnp.sum(w_pos, axis=-1, keepdims=True) + smooth
        num2 = jnp.sum(focal_term(logpt_neg) * w_neg, axis=-1, keepdims=True)
        den2 = jnp.sum(w_neg, axis=-1, keepdims=True) + smooth

        row_loss = num1 / den1 + num2 / den2         # (TB, 1)
        if needs_row_mask:
            row_loss = jnp.where(valid2d[:, 0:1], row_loss, 0.0)

        acc_ref[...] += jnp.sum(row_loss, axis=0, keepdims=True)

        @pl.when(step == pl.num_programs(0) - 1)
        def _():
            out_ref[...] = acc_ref[...] * inv_b

    return kernel


def _choose_tile_rows(B, L, itemsizes, block_rows, budget_bytes):
    """Largest row tile that (double-buffered) fits the VMEM budget."""
    per_row = 2 * L * sum(itemsizes)                 # x2: double-buffered inputs
    tb = min(int(block_rows), B)
    while tb > 8 and tb * per_row > budget_bytes:
        tb //= 2
    if tb < B:
        tb = max(8, (tb // 8) * 8)                   # sublane-aligned partial tile
    return min(tb, B)


def atpf_loss(logits, labels, mask=None, *, alpha=1.0, gamma=2.0,
              smooth=1e-7, block_rows=512):
    """Pallas TPU implementation of ATPFLoss.forward (reduction='mean')."""
    logits = jnp.asarray(logits)
    labels = jnp.asarray(labels)
    if jnp.issubdtype(labels.dtype, jnp.bool_):
        labels = labels.astype(jnp.int8)
    has_mask = mask is not None
    if has_mask:
        mask = jnp.asarray(mask)
        if jnp.issubdtype(mask.dtype, jnp.bool_):
            mask = mask.astype(jnp.int8)

    B, L = logits.shape
    assert labels.shape == (B, L)

    itemsizes = [logits.dtype.itemsize, labels.dtype.itemsize]
    if has_mask:
        itemsizes.append(mask.dtype.itemsize)
    tb = _choose_tile_rows(B, L, itemsizes, block_rows, budget_bytes=24 << 20)
    grid = (pl.cdiv(B, tb),)
    needs_row_mask = (B % tb) != 0

    block = (tb, L)
    in_specs = [pl.BlockSpec(block, lambda i: (i, 0)),
                pl.BlockSpec(block, lambda i: (i, 0))]
    args = [logits, labels]
    if has_mask:
        in_specs.append(pl.BlockSpec(block, lambda i: (i, 0)))
        args.append(mask)

    kernel = _make_atpf_kernel(B, tb, L, has_mask, float(alpha), float(gamma),
                               float(smooth), needs_row_mask)

    out = pl.pallas_call(
        kernel,
        out_shape=jax.ShapeDtypeStruct((1, 1), jnp.float32),
        grid_spec=pltpu.PrefetchScalarGridSpec(
            num_scalar_prefetch=0,
            grid=grid,
            in_specs=in_specs,
            out_specs=pl.BlockSpec((1, 1), lambda i: (0, 0)),
            scratch_shapes=[pltpu.VMEM((1, 1), jnp.float32)],
        ),
        compiler_params=pltpu.CompilerParams(
            dimension_semantics=("arbitrary",),
            vmem_limit_bytes=32 * 1024 * 1024,
        ),
    )(*args)
    return out[0, 0]


def _atpf_loss_ref(logits, labels, mask=None, alpha=1.0, gamma=2.0, smooth=1e-7):
    """Pure-JAX reference mirroring the PyTorch ATPFLoss.forward exactly."""
    logits = jnp.asarray(logits, jnp.float32)
    labels = jnp.asarray(labels, jnp.float32)
    B, L = logits.shape
    if mask is not None:
        logits = jnp.where(jnp.asarray(mask) == 0, _NEG_INF, logits)
    th_logits = jnp.broadcast_to(logits[:, 0:1], (B, L))
    labels = labels.at[:, 0].set(0.0)

    def focal(pair_logits, w):
        logpt = jax.nn.log_softmax(pair_logits, axis=-1)[:, :, 0]
        pt = jnp.clip(jnp.exp(logpt), smooth, 1.0 - smooth)
        loss = -alpha * _pow_gamma(1.0 - pt, gamma) * logpt * w
        return loss.sum(1) / (w.sum(1) + smooth)

    pos_logits = jnp.stack([logits, th_logits], axis=-1)
    loss1 = focal(pos_logits, labels)

    n_mask = 1.0 - labels
    n_mask = n_mask.at[:, 0].set(0.0)
    if mask is not None:
        n_mask = jnp.where(jnp.asarray(mask) == 0, 0.0, n_mask)
    neg_logits = jnp.stack([th_logits, logits], axis=-1)
    loss2 = focal(neg_logits, n_mask)

    return jnp.mean(loss1 + loss2)


if __name__ == "__main__":
    key = jax.random.PRNGKey(0)
    k1, k2, k3, k4, k5 = jax.random.split(key, 5)

    # Case 1: mask=None path (no mask stream DMA'd), batch grid of 2 tiles.
    B1, L1 = 16, 8
    logits1 = jax.random.normal(k1, (B1, L1), dtype=jnp.float32)
    labels1 = (jax.random.uniform(k2, (B1, L1)) > 0.5).astype(jnp.float32)
    out1 = jax.block_until_ready(atpf_loss(logits1, labels1, mask=None, block_rows=8))
    ref1 = _atpf_loss_ref(logits1, labels1, mask=None)
    assert jnp.allclose(out1, ref1, rtol=1e-5, atol=1e-6), (out1, ref1)

    # Case 2: external mask; labels/mask travel as int8 (1 byte/elem on the wire).
    B2, L2 = 10, 16
    logits2 = jax.random.normal(k3, (B2, L2), dtype=jnp.float32)
    mask2 = (jax.random.uniform(k4, (B2, L2)) > 0.2).astype(jnp.int8)
    mask2 = mask2.at[:, 0].set(1)  # keep the threshold class visible
    labels2 = ((jax.random.uniform(k5, (B2, L2)) > 0.6) & (mask2 > 0)).astype(jnp.int8)
    out2 = jax.block_until_ready(atpf_loss(logits2, labels2, mask=mask2))
    ref2 = _atpf_loss_ref(logits2, labels2, mask=mask2)
    assert jnp.allclose(out2, ref2, rtol=1e-5, atol=1e-6), (out2, ref2)

    print("KERNEL_OK")
</pallas_src>

<mosaic_0001>
module attributes {stable_mosaic.version = 11 : i64} {
  func.func @kernel(%arg0: i32, %arg1: memref<8x8xf32, #tpu.memory_space<vmem>>, %arg2: memref<8x8xf32, #tpu.memory_space<vmem>>, %arg3: memref<1x1xf32, #tpu.memory_space<vmem>>, %arg4: memref<1x1xf32, #tpu.memory_space<vmem>>) attributes {dimension_semantics = [#tpu.dimension_semantics<arbitrary>], iteration_bounds = array<i64: 2>, scalar_prefetch = 0 : i64, scratch_operands = 1 : i64, tpu.core_type = #tpu.core_type<tc>, window_params = [{transform_indices = @transform_0, window_bounds = array<i64: 8, 8>}, {transform_indices = @transform_1, window_bounds = array<i64: 8, 8>}, {pipeline_mode = #tpu.pipeline_mode<synchronous>, transform_indices = @transform_2, window_bounds = array<i64: 1, 1>}]} {
    %c0_i32 = arith.constant 0 : i32
    %0 = arith.cmpi eq, %arg0, %c0_i32 : i32
    %1 = arith.extui %0 : i1 to i32
    %c0_i32_0 = arith.constant 0 : i32
    %2 = arith.cmpi ne, %1, %c0_i32_0 : i32
    scf.if %2 {
      %cst_31 = arith.constant 0.000000e+00 : f32
      %77 = vector.broadcast %cst_31 : f32 to vector<1x1xf32>
      %c0_32 = arith.constant 0 : index
      %c0_33 = arith.constant 0 : index
      %78 = vector.load %arg4[%c0_32, %c0_33] : memref<1x1xf32, #tpu.memory_space<vmem>>, vector<1x1xf32>
      tpu.vector_store %arg4[%c0_32, %c0_33], %77 {strides = array<i32>} : memref<1x1xf32, #tpu.memory_space<vmem>>, vector<1x1xf32>,
    } else {
    }
    %c0 = arith.constant 0 : index
    %c0_1 = arith.constant 0 : index
    %3 = vector.load %arg1[%c0, %c0_1] : memref<8x8xf32, #tpu.memory_space<vmem>>, vector<8x8xf32>
    %c0_2 = arith.constant 0 : index
    %c0_3 = arith.constant 0 : index
    %4 = vector.load %arg2[%c0_2, %c0_3] : memref<8x8xf32, #tpu.memory_space<vmem>>, vector<8x8xf32>
    %5 = tpu.iota {dimensions = array<i32: 1>} : vector<8x8xi32>
    %c0_i32_4 = arith.constant 0 : i32
    %6 = vector.broadcast %c0_i32_4 : i32 to vector<8x8xi32>
    %7 = arith.cmpi ne, %5, %6 : vector<8x8xi32>
    %cst = arith.constant 0.000000e+00 : f32
    %8 = vector.broadcast %cst : f32 to vector<8x8xf32>
    %9 = arith.select %7, %4, %8 : vector<8x8xi1>, vector<8x8xf32>
    %10 = vector.extract_strided_slice %3 {offsets = [0, 0], sizes = [8, 1], strides = [1, 1]} : vector<8x8xf32> to vector<8x1xf32>
    %11 = vector.broadcast %10 : vector<8x1xf32> to vector<8x8xf32>
    %12 = arith.subf %3, %11 : vector<8x8xf32>
    %13 = math.absf %12 : vector<8x8xf32>
    %cst_5 = arith.constant 0.000000e+00 : f32
    %14 = vector.broadcast %cst_5 : f32 to vector<8x8xf32>
    %15 = arith.subf %14, %13 : vector<8x8xf32>
    %16 = math.exp %15 : vector<8x8xf32>
    %17 = math.log1p %16 : vector<8x8xf32>
    %cst_6 = arith.constant 0.000000e+00 : f32
    %18 = vector.broadcast %cst_6 : f32 to vector<8x8xf32>
    %19 = arith.minimumf %12, %18 : vector<8x8xf32>
    %20 = arith.subf %19, %17 : vector<8x8xf32>
    %cst_7 = arith.constant 0.000000e+00 : f32
    %21 = vector.broadcast %cst_7 : f32 to vector<8x8xf32>
    %22 = arith.subf %21, %12 : vector<8x8xf32>
    %cst_8 = arith.constant 0.000000e+00 : f32
    %23 = vector.broadcast %cst_8 : f32 to vector<8x8xf32>
    %24 = arith.minimumf %22, %23 : vector<8x8xf32>
    %25 = arith.subf %24, %17 : vector<8x8xf32>
    %cst_9 = arith.constant 1.000000e+00 : f32
    %26 = vector.broadcast %cst_9 : f32 to vector<8x8xf32>
    %27 = arith.subf %26, %9 : vector<8x8xf32>
    %cst_10 = arith.constant 0.000000e+00 : f32
    %28 = vector.broadcast %cst_10 : f32 to vector<8x8xf32>
    %29 = arith.select %7, %27, %28 : vector<8x8xi1>, vector<8x8xf32>
    %30 = math.exp %20 : vector<8x8xf32>
    %cst_11 = arith.constant 1.000000e-07 : f32
    %cst_12 = arith.constant 0.99999988 : f32
    %31 = vector.broadcast %cst_11 : f32 to vector<8x8xf32>
    %32 = arith.maximumf %31, %30 : vector<8x8xf32>
    %33 = vector.broadcast %cst_12 : f32 to vector<8x8xf32>
    %34 = arith.minimumf %33, %32 : vector<8x8xf32>
    %cst_13 = arith.constant 1.000000e+00 : f32
    %35 = vector.broadcast %cst_13 : f32 to vector<8x8xf32>
    %36 = arith.subf %35, %34 : vector<8x8xf32>
    %37 = arith.mulf %36, %36 : vector<8x8xf32>
    %cst_14 = arith.constant -1.000000e+00 : f32
    %38 = vector.broadcast %cst_14 : f32 to vector<8x8xf32>
    %39 = arith.mulf %38, %37 : vector<8x8xf32>
    %40 = arith.mulf %39, %20 : vector<8x8xf32>
    %41 = arith.mulf %40, %9 : vector<8x8xf32>
    %cst_15 = arith.constant dense<0.000000e+00> : vector<8xf32>
    %42 = vector.multi_reduction <add>, %41, %cst_15 [1] : vector<8x8xf32> to vector<8xf32>
    %43 = vector.shape_cast %42 : vector<8xf32> to vector<8x1xf32>
    %cst_16 = arith.constant dense<0.000000e+00> : vector<8xf32>
    %44 = vector.multi_reduction <add>, %9, %cst_16 [1] : vector<8x8xf32> to vector<8xf32>
    %45 = vector.shape_cast %44 : vector<8xf32> to vector<8x1xf32>
    %cst_17 = arith.constant 1.000000e-07 : f32
    %46 = vector.broadcast %cst_17 : f32 to vector<8x1xf32>
    %47 = arith.addf %45, %46 : vector<8x1xf32>
    %48 = math.exp %25 : vector<8x8xf32>
    %cst_18 = arith.constant 1.000000e-07 : f32
    %cst_19 = arith.constant 0.99999988 : f32
    %49 = vector.broadcast %cst_18 : f32 to vector<8x8xf32>
    %50 = arith.maximumf %49, %48 : vector<8x8xf32>
    %51 = vector.broadcast %cst_19 : f32 to vector<8x8xf32>
    %52 = arith.minimumf %51, %50 : vector<8x8xf32>
    %cst_20 = arith.constant 1.000000e+00 : f32
    %53 = vector.broadcast %cst_20 : f32 to vector<8x8xf32>
    %54 = arith.subf %53, %52 : vector<8x8xf32>
    %55 = arith.mulf %54, %54 : vector<8x8xf32>
    %cst_21 = arith.constant -1.000000e+00 : f32
    %56 = vector.broadcast %cst_21 : f32 to vector<8x8xf32>
    %57 = arith.mulf %56, %55 : vector<8x8xf32>
    %58 = arith.mulf %57, %25 : vector<8x8xf32>
    %59 = arith.mulf %58, %29 : vector<8x8xf32>
    %cst_22 = arith.constant dense<0.000000e+00> : vector<8xf32>
    %60 = vector.multi_reduction <add>, %59, %cst_22 [1] : vector<8x8xf32> to vector<8xf32>
    %61 = vector.shape_cast %60 : vector<8xf32> to vector<8x1xf32>
    %cst_23 = arith.constant dense<0.000000e+00> : vector<8xf32>
    %62 = vector.multi_reduction <add>, %29, %cst_23 [1] : vector<8x8xf32> to vector<8xf32>
    %63 = vector.shape_cast %62 : vector<8xf32> to vector<8x1xf32>
    %cst_24 = arith.constant 1.000000e-07 : f32
    %64 = vector.broadcast %cst_24 : f32 to vector<8x1xf32>
    %65 = arith.addf %63, %64 : vector<8x1xf32>
    %66 = arith.divf %43, %47 : vector<8x1xf32>
    %67 = arith.divf %61, %65 : vector<8x1xf32>
    %68 = arith.addf %66, %67 : vector<8x1xf32>
    %c0_25 = arith.constant 0 : index
    %c0_26 = arith.constant 0 : index
    %69 = vector.load %arg4[%c0_25, %c0_26] : memref<1x1xf32, #tpu.memory_space<vmem>>, vector<1x1xf32>
    %cst_27 = arith.constant dense<0.000000e+00> : vector<1xf32>
    %70 = vector.multi_reduction <add>, %68, %cst_27 [0] : vector<8x1xf32> to vector<1xf32>
    %71 = vector.shape_cast %70 : vector<1xf32> to vector<1x1xf32>
    %72 = arith.addf %69, %71 : vector<1x1xf32>
    %c0_28 = arith.constant 0 : index
    %c0_29 = arith.constant 0 : index
    %73 = vector.load %arg4[%c0_28, %c0_29] : memref<1x1xf32, #tpu.memory_space<vmem>>, vector<1x1xf32>
    tpu.vector_store %arg4[%c0_28, %c0_29], %72 {strides = array<i32>} : memref<1x1xf32, #tpu.memory_space<vmem>>, vector<1x1xf32>,
    %c1_i32 = arith.constant 1 : i32
    %74 = arith.cmpi eq, %arg0, %c1_i32 : i32
    %75 = arith.extui %74 : i1 to i32
    %c0_i32_30 = arith.constant 0 : i32
    %76 = arith.cmpi ne, %75, %c0_i32_30 : i32
    scf.if %76 {
      %c0_31 = arith.constant 0 : index
      %c0_32 = arith.constant 0 : index
      %77 = vector.load %arg4[%c0_31, %c0_32] : memref<1x1xf32, #tpu.memory_space<vmem>>, vector<1x1xf32>
      %cst_33 = arith.constant 6.250000e-02 : f32
      %78 = vector.broadcast %cst_33 : f32 to vector<1x1xf32>
      %79 = arith.mulf %77, %78 : vector<1x1xf32>
      %c0_34 = arith.constant 0 : index
      %c0_35 = arith.constant 0 : index
      %80 = vector.load %arg3[%c0_34, %c0_35] : memref<1x1xf32, #tpu.memory_space<vmem>>, vector<1x1xf32>
      tpu.vector_store %arg3[%c0_34, %c0_35], %79 {strides = array<i32>} : memref<1x1xf32, #tpu.memory_space<vmem>>, vector<1x1xf32>,
    } else {
    }
    return
  }
  func.func @transform_0(%arg0: i32) -> (i32, i32) {
    %c0_i32 = arith.constant 0 : i32
    %c0_i32_0 = arith.constant 0 : i32
    return %arg0, %c0_i32 : i32, i32
  }
  func.func @transform_1(%arg0: i32) -> (i32, i32) {
    %c0_i32 = arith.constant 0 : i32
    %c0_i32_0 = arith.constant 0 : i32
    return %arg0, %c0_i32 : i32, i32
  }
  func.func @transform_2(%arg0: i32) -> (i32, i32) {
    %c0_i32 = arith.constant 0 : i32
    %c0_i32_0 = arith.constant 0 : i32
    %c0_i32_1 = arith.constant 0 : i32
    return %c0_i32, %c0_i32_0 : i32, i32
  }
}

</mosaic_0001>

<llo_original>
// kernel: tpu_custom_call.1
$region0: #{tpu_custom_call.1}
  #allocation0 [shape = 'u32[]', space=smem, size = 0x4, offset = 0x4, fixed_abs, tag = 'smem constant byte address 0x4 - core index']
  #allocation1 [shape = 'u32[144,128]{1,0:T(1,128)}', space=vmem, size = 0x12000, scoped, tag = 'internal scratch']
  #allocation2 [shape = 'f32[1,1]{1,0:T(1,128)}', space=vmem, size = 0x200, scoped, tag = 'scratch operand']
  %s0 = inlined_call_operand.vmem [shape: f32[16,8], index: 0, kind: input, shape index: {}]
  %s1 = inlined_call_operand.vmem [shape: f32[16,8], index: 1, kind: input, shape index: {}]
  %s2 = inlined_call_operand.hbm [shape: f32[1,1], index: 2, kind: output, shape index: {}]
  %s3 = sld [smem:[#allocation0]]
  $region49: #{tpu_custom_call.1} parent=0
    _
  %s5 = ssub.s32 1, %s3
  %s6 = scalar_select 0, %s5, %s3
  $region1: #{tpu_custom_call.1} parent=0
    #allocation3 [shape = 'u8[512]{0}', space=vmem, size = 0x400, scoped, tag = 'output window, operand 0, single buffered']
    #allocation4 [shape = 's32[2]{0}', space=sflag, size = 0x8, scoped, tag = 'scoped memory for tpu_custom_call.1']
    %7 = vsyncpa [#allocation4], 0
    loop: start=0, step=1, limit=4
    $region2: #{tpu_custom_call.1} parent=1 // loop_pre_header
      _
    $region3: #{tpu_custom_call.1} parent=1 // loop_header
      %s9 = sphi 0, %s13
      %p10 = scmp.ge.s32.totalorder %s9, 4
      %s19 = sphi 0, %s21
      %s22 = sphi 0, %s19
      %s23 = sphi 0, %s22
      %s39 = sphi 0, %s23
      %s45 = sphi 0, %s47
      %s48 = sphi 0, %s45
      %s49 = sphi 0, %s48
      %s65 = sphi 0, %s49
      %s69 = sphi 0, %s69
      %s71 = sphi 0, %s69
      %s72 = sphi 0, %s71
      %s86 = sphi 0, %s72
    $region4: #{tpu_custom_call.1} parent=1 // loop_header_branch
      %12 = sbr.rel (%p10) target = $region8
    $region5: #{tpu_custom_call.1} parent=1 // loop_body
      %s14 = ssub.s32 %s9, 1
      %s15 = ssub.s32 %s9, 2
      %s16 = sadd.s32 %s9, 1
      %s17 = ssub.s32 %s9, %s16
      %p18 = scmp.eq.s32.totalorder %s17, 0
      %s20 = sadd.s32 %s19, 1
      %s21 = scalar_select %p18, %s19, %s20
      %p24 = pneg %p18
      %p25 = scmp.eq.s32.totalorder %s9, 1
      %p26 = por %p24, %p25
      %p27 = scmp.ne.s32.totalorder %s19, %s22
      %p28 = scmp.eq.s32.totalorder %s9, 0
      %p29 = por %p27, %p28
      %p30 = scmp.ne.s32.totalorder %s19, %s22
      %p31 = scmp.eq.s32.totalorder %s14, 1
      %p32 = por %p30, %p31
      %p33 = scmp.ne.s32.totalorder %s22, %s23
      %p34 = scmp.eq.s32.totalorder %s14, 0
      %p35 = por %p33, %p34
      %p36 = scmp.ne.s32.totalorder %s22, %s23
      %p37 = scmp.eq.s32.totalorder %s15, 1
      %p38 = por %p36, %p37
      %p40 = scmp.ne.s32.totalorder %s23, %s39
      %p41 = scmp.eq.s32.totalorder %s15, 0
      %p42 = por %p40, %p41
      %s43 = ssub.s32 %s9, %s16
      %p44 = scmp.eq.s32.totalorder %s43, 0
      %s46 = sadd.s32 %s45, 1
      %s47 = scalar_select %p44, %s45, %s46
      %p50 = pneg %p44
      %p51 = scmp.eq.s32.totalorder %s9, 1
      %p52 = por %p50, %p51
      %p53 = scmp.ne.s32.totalorder %s45, %s48
      %p54 = scmp.eq.s32.totalorder %s9, 0
      %p55 = por %p53, %p54
      %p56 = scmp.ne.s32.totalorder %s45, %s48
      %p57 = scmp.eq.s32.totalorder %s14, 1
      %p58 = por %p56, %p57
      %p59 = scmp.ne.s32.totalorder %s48, %s49
      %p60 = scmp.eq.s32.totalorder %s14, 0
      %p61 = por %p59, %p60
      %p62 = scmp.ne.s32.totalorder %s48, %s49
      %p63 = scmp.eq.s32.totalorder %s15, 1
      %p64 = por %p62, %p63
      %p66 = scmp.ne.s32.totalorder %s49, %s65
      %p67 = scmp.eq.s32.totalorder %s15, 0
      %p68 = por %p66, %p67
      %s70 = sadd.s32 %s69, 1
      %p73 = scmp.eq.s32.totalorder %s9, 1
      %p74 = scmp.ne.s32.totalorder %s69, %s71
      %p75 = scmp.eq.s32.totalorder %s9, 0
      %p76 = por %p74, %p75
      %p77 = scmp.ne.s32.totalorder %s69, %s71
      %p78 = scmp.eq.s32.totalorder %s14, 1
      %p79 = por %p77, %p78
      %p80 = scmp.ne.s32.totalorder %s71, %s72
      %p81 = scmp.eq.s32.totalorder %s14, 0
      %p82 = por %p80, %p81
      %p83 = scmp.ne.s32.totalorder %s71, %s72
      %p84 = scmp.eq.s32.totalorder %s15, 1
      %p85 = por %p83, %p84
      %p87 = scmp.ne.s32.totalorder %s72, %s86
      %p88 = scmp.eq.s32.totalorder %s15, 0
      %p89 = por %p87, %p88
      %p90 = scmp.le.s32.totalorder 1, %s9
      %p91 = scmp.lt.s32.totalorder %s9, 3
      %p92 = pnand %p90, %p91
      %p93 = pneg %p92
      // Predicated region
      $region9: #{tpu_custom_call.1} parent=5 // pred_check
        _
      $region10: #{tpu_custom_call.1} parent=5 // pred_check_branch
        %95 = sbr.rel (%p92) target = $region12
      $region11: #{tpu_custom_call.1} parent=5 // pred_region
        %s96 = ssub.s32 %s9, 1
      $region12: #{tpu_custom_call.1} parent=5 // pred_fallthru
        _
      %p97 = scmp.lt.s32.totalorder %s9, 2
      // Predicated region
      $region13: #{tpu_custom_call.1} parent=5 // pred_check
        %p98 = pneg %p97
      $region14: #{tpu_custom_call.1} parent=5 // pred_check_branch
        %100 = sbr.rel (%p98) target = $region16
      $region15: #{tpu_custom_call.1} parent=5 // pred_region
        // Predicated region
        $region17: #{tpu_custom_call.1} parent=15 // pred_check
          %p101 = pneg %p29
        $region18: #{tpu_custom_call.1} parent=15 // pred_check_branch
          %103 = sbr.rel (%p101) target = $region20
        $region19: #{tpu_custom_call.1} parent=15 // pred_region
          %p104 = scmp.lt.s32.totalorder %s9, 1
          %s105 = scalar_select %p104, %s9, 1
          %s106 = smul.addr %s105, 8
          %s107 = scalar_lea.vmem %s0, %s106
        $region20: #{tpu_custom_call.1} parent=15 // pred_fallthru
          _
        // Predicated region
        $region21: #{tpu_custom_call.1} parent=15 // pred_check
          %p108 = pneg %p55
        $region22: #{tpu_custom_call.1} parent=15 // pred_check_branch
          %110 = sbr.rel (%p108) target = $region24
        $region23: #{tpu_custom_call.1} parent=15 // pred_region
          %p111 = scmp.lt.s32.totalorder %s9, 1
          %s112 = scalar_select %p111, %s9, 1
          %s113 = smul.addr %s112, 8
          %s114 = scalar_lea.vmem %s1, %s113
        $region24: #{tpu_custom_call.1} parent=15 // pred_fallthru
          _
      $region16: #{tpu_custom_call.1} parent=5 // pred_fallthru
        _
      %p115 = scmp.le.s32.totalorder 1, %s9
      %p116 = scmp.lt.s32.totalorder %s9, 3
      %p117 = pnand %p115, %p116
      %p118 = pneg %p117
      // Predicated region
      $region25: #{tpu_custom_call.1} parent=5 // pred_check
        _
      $region26: #{tpu_custom_call.1} parent=5 // pred_check_branch
        %120 = sbr.rel (%p117) target = $region28
      $region27: #{tpu_custom_call.1} parent=5 // pred_region
        %s121 = ssub.s32 %s9, 1
        %p122 = scmp.lt.s32.totalorder %s14, 1
        %s123 = scalar_select %p122, %s14, 1
        %s124 = smul.addr %s123, 8
        %s125 = scalar_lea.vmem %s0, %s124
        %p126 = pneg %p35
        %p127 = pneg %p32
        %p128 = scmp.lt.s32.totalorder %s14, 1
        %s129 = scalar_select %p128, %s14, 1
        %s130 = smul.addr %s129, 8
        %s131 = scalar_lea.vmem %s1, %s130
        %p132 = pneg %p61
        %p133 = pneg %p58
        %p134 = pneg %p82
        %p135 = pneg %p79
        %p136 = scmp.lt.s32.totalorder %s14, 1
        %s137 = scalar_select %p136, %s14, 1
        %s138 = smul.addr %s137, 8
        %s139 = scalar_lea.vmem %s0, %s138
        %p140 = scmp.lt.s32.totalorder %s14, 1
        %s141 = scalar_select %p140, %s14, 1
        %s142 = smul.addr %s141, 8
        %s143 = scalar_lea.vmem %s1, %s142
        %p144 = scmp.eq.s32.totalorder %s14, 0
        // Predicated region
        $region29: #{tpu_custom_call.1} parent=27 // pred_check
          %p145 = pneg %p144
        $region30: #{tpu_custom_call.1} parent=27 // pred_check_branch
          %147 = sbr.rel (%p145) target = $region32
        $region31: #{tpu_custom_call.1} parent=27 // pred_region
          %vm148 = vcmask 0
          %149 = vst.msk [vmem:[#allocation2] sm:$0x1] %vm148, 0.0
        $region32: #{tpu_custom_call.1} parent=27 // pred_fallthru
          _
        %v150 = vld [vmem:[%s139] sm:$0xff]
        %v151 = vld [vmem:[%s143] sm:$0xff]
        %v152 = vlaneseq
        %v153 = vand.u32 %v152, 127
        %vm154 = vcmp.ne.s32.totalorder %v153, 0
        %v155 = vsel %vm154, %v151, 0.0
        %157 = vset.pattern.permute.xlu0 0
        %158 = vperm.xlu0 %157, %v150
        %v159 = vpop.permute.xlu0 %158
        %v161 = vsub.f32 %v150, %v159
        %v162 = vand.u32 2147483647, %v161
        %v163 = vsub.f32 0.0, %v162
        %v164 = vmul.f32 %v163, 1.442695
        %v165 = vpow.pop %v164
        %v166 = vadd.f32 %v165, 1.0
        %v167 = vlog2.pop %v166
        %v168 = vmul.f32 %v167, 0.6931472
        %v169 = vmul.f32 -0.5, %v165
        %v170 = vadd.f32 %v169, 1.0
        %v171 = vmul.f32 %v170, %v165
        %v172 = vand.u32 2147483647, %v165
        %vm173 = vcmp.lt.f32.partialorder %v172, 0.0004427343
        %v174 = vsel %vm173, %v171, %v168
        %v175 = vmin.f32 %v161, 0.0
        %v176 = vsub.f32 %v175, %v174
        %v177 = vsub.f32 0.0, %v161
        %v178 = vmin.f32 %v177, 0.0
        %v179 = vsub.f32 %v178, %v174
        %v180 = vsub.f32 1.0, %v155
        %v181 = vsel %vm154, %v180, 0.0
        %v182 = vmul.f32 %v176, 1.442695
        %v183 = vpow.pop %v182
        %v184 = vmax.f32 %v183, 1e-07
        %v185 = vmin.f32 %v184, 0.9999999
        %v186 = vsub.f32 1.0, %v185
        %v187 = vmul.f32 %v186, %v186
        %v188 = vmul.f32 %v187, -1.0
        %v189 = vmul.f32 %v188, %v176
        %v190 = vmul.f32 %v189, %v155
        %vm191 = vcmask 64512
        %v192 = vsel %vm191, %v190, 0.0
        %193 = vadd.xlane.f32.xlu0 %v192
        %v194 = vpop.xlane.xlu0 %193
        %v195 = vsel %vm191, %v155, 0.0
        %196 = vadd.xlane.f32.xlu0 %v195
        %v197 = vpop.xlane.xlu0 %196
        %v198 = vadd.f32 %v197, 1e-07
        %v199 = vmul.f32 %v179, 1.442695
        %v200 = vpow.pop %v199
        %v201 = vmax.f32 %v200, 1e-07
        %v202 = vmin.f32 %v201, 0.9999999
        %v203 = vsub.f32 1.0, %v202
        %v204 = vmul.f32 %v203, %v203
        %v205 = vmul.f32 %v204, -1.0
        %v206 = vmul.f32 %v205, %v179
        %v207 = vmul.f32 %v206, %v181
        %v208 = vsel %vm191, %v207, 0.0
        %209 = vadd.xlane.f32.xlu0 %v208
        %v210 = vpop.xlane.xlu0 %209
        %v211 = vsel %vm191, %v181, 0.0
        %212 = vadd.xlane.f32.xlu0 %v211
        %v213 = vpop.xlane.xlu0 %212
        %v214 = vadd.f32 %v213, 1e-07
        %v215 = vrcp.pop %v198
        %v216 = vmul.f32 %v194, %v215
        %v217 = vrcp.pop %v214
        %v218 = vmul.f32 %v210, %v217
        %v219 = vadd.f32 %v216, %v218
        %v220 = vld [vmem:[#allocation2] sm:$0x1]
        %v221 = vrot.slane %v219, 4
        %v222 = vadd.f32 %v219, %v221
        %v223 = vrot.slane %v222, 2
        %v224 = vadd.f32 %v222, %v223
        %v225 = vrot.slane %v224, 1
        %v226 = vadd.f32 %v224, %v225
        %v227 = vadd.f32 %v220, %v226
        %vm228 = vcmask 0
        %229 = vst.msk [vmem:[#allocation2] sm:$0x1] %vm228, %v227
        %p230 = scmp.eq.s32.totalorder %s14, 1
        // Predicated region
        $region33: #{tpu_custom_call.1} parent=27 // pred_check
          %p231 = pneg %p230
        $region34: #{tpu_custom_call.1} parent=27 // pred_check_branch
          %233 = sbr.rel (%p231) target = $region36
        $region35: #{tpu_custom_call.1} parent=27 // pred_region
          %v234 = vld [vmem:[#allocation2] sm:$0x1]
          %v235 = vmul.f32 %v234, 0.0625
          %236 = vst.msk [vmem:[#allocation3] sm:$0x1] %vm228, %v235
        $region36: #{tpu_custom_call.1} parent=27 // pred_fallthru
          _
        // Predicated region
        $region37: #{tpu_custom_call.1} parent=27 // pred_check
          %p237 = pneg %p79
        $region38: #{tpu_custom_call.1} parent=27 // pred_check_branch
          %239 = sbr.rel (%p237) target = $region40
        $region39: #{tpu_custom_call.1} parent=27 // pred_region
          %s241 = ssub.s32 16, 16
          %242 = vsyncadd [#allocation4], %s241
          %s244 = sshll.u32 [#allocation3], 4
          %s245 = int_to_ptr.vmem [resolvable:$true] %s244
          %247 = dma.vmem_to_hbm [thread:$0]  %s245, 16, %s2, [#allocation4]
        $region40: #{tpu_custom_call.1} parent=27 // pred_fallthru
          _
        // Predicated region
        $region41: #{tpu_custom_call.1} parent=27 // pred_check
          %p248 = pneg %p79
        $region42: #{tpu_custom_call.1} parent=27 // pred_check_branch
          %250 = sbr.rel (%p248) target = $region44
        $region43: #{tpu_custom_call.1} parent=27 // pred_region
          %251 = dma.done [#allocation4], 16
        $region44: #{tpu_custom_call.1} parent=27 // pred_fallthru
          _
      $region28: #{tpu_custom_call.1} parent=5 // pred_fallthru
        _
      %p252 = scmp.le.s32.totalorder 2, %s9
      // Predicated region
      $region45: #{tpu_custom_call.1} parent=5 // pred_check
        %p253 = pneg %p252
      $region46: #{tpu_custom_call.1} parent=5 // pred_check_branch
        %255 = sbr.rel (%p253) target = $region48
      $region47: #{tpu_custom_call.1} parent=5 // pred_region
        %s256 = ssub.s32 %s9, 2
      $region48: #{tpu_custom_call.1} parent=5 // pred_fallthru
        _
    $region6: #{tpu_custom_call.1} parent=1 // loop_footer
      %s13 = sadd.s32 1, %s9
    $region7: #{tpu_custom_call.1} parent=1 // loop_footer_branch
      %8 = sbr.rel target = $region3
    $region8: #{tpu_custom_call.1} parent=1 // loop_exit
      _
    %257 = vsyncpa [#allocation4], 1
    %s258 = scalar_lea.sflag [#allocation4], 1
    %259 = vsyncpa %s258, 1

</llo_original>
